<compile_context>
chip_gen: v7x
topology: tpu7x:2x2x1
jax: 0.10.0
libtpu: 0.0.40
codegen_flags: <defaults>
</compile_context>

<pallas_src>
import functools

import jax
import jax.numpy as jnp
from jax.experimental import pallas as pl
from jax.experimental.pallas import tpu as pltpu

_RMS_EPS = 1.1920929e-07      # torch.finfo(float32).eps (F.rms_norm default)
_ATTN_SCALE = 0.12
_NEG_INF = -1e30              # large-negative mask fill (avoids inf-inf NaN)
_VMEM_LIMIT = 48 * 1024 * 1024


# ---------------------------------------------------------------------------
# helpers
# ---------------------------------------------------------------------------
def _pick_tile(d, cap, multiple=8):
    """Largest tile <= cap that divides d (prefer multiples of `multiple`)."""
    if d <= cap:
        return d
    for t in range(cap, 0, -1):
        if d % t == 0 and t % multiple == 0:
            return t
    for t in range(cap, 0, -1):          # TODO(synk): pad instead
        if d % t == 0:
            return t
    return d


# ---------------------------------------------------------------------------
# Pallas kernels
# ---------------------------------------------------------------------------
def _mix_rms_linear_kernel(lam_ref, x_ref, x0_ref, w_ref, o_ref, mix_ref,
                           *, mm_dtype):
    """Block mix (lam0*x + lam1*x0) + rms_norm fused into the QKV matmul.

    Requires the full K (=dim) in one tile (true for model dims).  x_mix is
    emitted as a second output (needed later as the attention residual).
    """
    f32 = jnp.float32
    x = x_ref[...].astype(f32)
    x0 = x0_ref[...].astype(f32)
    mixed = lam_ref[0] * x + lam_ref[1] * x0
    h = mixed * jax.lax.rsqrt(jnp.mean(mixed * mixed, axis=-1, keepdims=True)
                              + _RMS_EPS)
    o_ref[...] = jax.lax.dot_general(
        h.astype(mm_dtype), w_ref[...].astype(mm_dtype),
        dimension_numbers=(((1,), (1,)), ((), ())),          # h @ w.T
        preferred_element_type=f32).astype(o_ref.dtype)

    @pl.when(pl.program_id(1) == 0)
    def _():
        mix_ref[...] = mixed.astype(mix_ref.dtype)


def _rms_linear_relu2_kernel(x_ref, w_ref, o_ref, *, mm_dtype):
    """rms_norm fused into the MLP c_fc matmul, relu(x)^2 epilogue."""
    f32 = jnp.float32
    x = x_ref[...].astype(f32)
    h = x * jax.lax.rsqrt(jnp.mean(x * x, axis=-1, keepdims=True) + _RMS_EPS)
    a = jax.lax.dot_general(
        h.astype(mm_dtype), w_ref[...].astype(mm_dtype),
        dimension_numbers=(((1,), (1,)), ((), ())),
        preferred_element_type=f32)
    a = jnp.maximum(a, 0.0)
    o_ref[...] = (a * a).astype(o_ref.dtype)


def _linear_residual_kernel(x_ref, w_ref, res_ref, o_ref, acc_ref, *, mm_dtype):
    """Tiled matmul (K-reduction grid axis) with fused residual-add epilogue."""
    @pl.when(pl.program_id(2) == 0)
    def _():
        acc_ref[...] = jnp.zeros_like(acc_ref)

    acc_ref[...] += jax.lax.dot_general(
        x_ref[...].astype(mm_dtype), w_ref[...].astype(mm_dtype),
        dimension_numbers=(((1,), (1,)), ((), ())),          # x @ w.T
        preferred_element_type=jnp.float32)

    @pl.when(pl.program_id(2) == pl.num_programs(2) - 1)
    def _():
        o_ref[...] = (acc_ref[...]
                      + res_ref[...].astype(jnp.float32)).astype(o_ref.dtype)


def _flash_attn_kernel(lam_ref, q_ref, k_ref, v_ref, ve_ref,
                       cosq_ref, sinq_ref, cosk_ref, sink_ref,
                       hsum_ref, rotp_ref, o_ref,
                       q_sc, acc_sc, m_sc, l_sc,
                       *, num_heads, head_dim, group, mm_dtype):
    """Flash (online-softmax) causal attention, all heads per kernel step.

    q_ref      : (tq,  H*D)   q columns of the fused qkv slab (bf16)
    k_ref/v_ref: (tkv, H*D)   k / v columns of the fused qkv slab
    ve_ref     : (tkv, H*D)   value embedding
    cos*/sin*  : (rows, group) rotary tables (sign baked into sin)
    hsum/rotp  : (group, group) per-128-lane-group constants (rms / half-roll)
    o_ref      : (tq,  H*D)   lane-dense attention output (bf16)
    scratch    : q_sc (tq,H*D) f32, acc_sc (tq,H*D) f32,
                 m_sc / l_sc (H, tq, 1) f32
    """
    f32 = jnp.float32
    qi = pl.program_id(0)
    ki = pl.program_id(1)
    tq = q_ref.shape[0]
    tkv = k_ref.shape[0]
    hdim = num_heads * head_dim
    n_groups = hdim // group
    inv_d = 1.0 / float(head_dim)

    hsum = hsum_ref[...]
    rotp = rotp_ref[...]

    def per_head_rms(a):
        outs = []
        for g in range(n_groups):
            ag = a[:, g * group:(g + 1) * group]
            ss = jax.lax.dot_general(ag * ag, hsum, (((1,), (0,)), ((), ())),
                                     preferred_element_type=f32)
            outs.append(ag * jax.lax.rsqrt(ss * inv_d + _RMS_EPS))
        # TODO(synk): lane concat only when hdim > 128; keep lane-group local.
        return outs[0] if n_groups == 1 else jnp.concatenate(outs, axis=-1)

    def rope(a, cos, sin):
        outs = []
        for g in range(n_groups):
            ag = a[:, g * group:(g + 1) * group]
            rolled = jax.lax.dot_general(ag, rotp, (((1,), (0,)), ((), ())),
                                         preferred_element_type=f32)
            outs.append(ag * cos + rolled * sin)
        return outs[0] if n_groups == 1 else jnp.concatenate(outs, axis=-1)

    # --- per-q-block init: online-softmax state + q prologue (once) ---------
    @pl.when(ki == 0)
    def _():
        q = q_ref[...].astype(f32)
        q_sc[...] = rope(per_head_rms(q), cosq_ref[...], sinq_ref[...])
        acc_sc[...] = jnp.zeros_like(acc_sc)
        m_sc[...] = jnp.full_like(m_sc, _NEG_INF)
        l_sc[...] = jnp.zeros_like(l_sc)

    # --- kv step: skip kv blocks entirely in the causal future --------------
    @pl.when(ki * tkv <= qi * tq + (tq - 1))
    def _():
        k = rope(per_head_rms(k_ref[...].astype(f32)),
                 cosk_ref[...], sink_ref[...])
        v = lam_ref[0] * v_ref[...].astype(f32) + lam_ref[1] * ve_ref[...].astype(f32)

        row = qi * tq + jax.lax.broadcasted_iota(jnp.int32, (tq, tkv), 0)
        col = ki * tkv + jax.lax.broadcasted_iota(jnp.int32, (tq, tkv), 1)
        causal = col <= row

        q_all = q_sc[...]
        for h in range(num_heads):
            sl = slice(h * head_dim, (h + 1) * head_dim)
            qh = q_all[:, sl].astype(mm_dtype)
            kh = k[:, sl].astype(mm_dtype)
            vh = v[:, sl]                           # keep f32 for P @ V accuracy

            s = jax.lax.dot_general(qh, kh, (((1,), (1,)), ((), ())),
                                    preferred_element_type=f32) * _ATTN_SCALE
            s = jnp.where(causal, s, _NEG_INF)

            m_prev = m_sc[h]
            l_prev = l_sc[h]
            m_new = jnp.maximum(m_prev, jnp.max(s, axis=-1, keepdims=True))
            alpha = jnp.exp(m_prev - m_new)
            p = jnp.exp(s - m_new)
            l_sc[h] = alpha * l_prev + jnp.sum(p, axis=-1, keepdims=True)
            acc_sc[:, sl] = alpha * acc_sc[:, sl] + jax.lax.dot_general(
                p, vh, (((1,), (0,)), ((), ())), preferred_element_type=f32)
            m_sc[h] = m_new

    # --- finalize: normalize and emit the lane-dense output block -----------
    @pl.when(ki == pl.num_programs(1) - 1)
    def _():
        for h in range(num_heads):
            sl = slice(h * head_dim, (h + 1) * head_dim)
            inv = pl.reciprocal(l_sc[h], approx=True)       # EUP slot
            o_ref[:, sl] = (acc_sc[:, sl] * inv).astype(o_ref.dtype)


# ---------------------------------------------------------------------------
# Pallas wrappers
# ---------------------------------------------------------------------------
def mix_rms_linear(x, x0, lambdas, w, *, tm=256, tn=256, mm_dtype=jnp.bfloat16):
    """(qkv, x_mix) = ((rms(lam0*x+lam1*x0)) @ w.T, lam0*x+lam1*x0)."""
    M, K = x.shape
    N, K2 = w.shape
    assert K == K2
    tm = _pick_tile(M, tm, 8)
    tn = _pick_tile(N, tn, 128)
    grid = (M // tm, N // tn)
    kernel = functools.partial(_mix_rms_linear_kernel, mm_dtype=mm_dtype)
    smem = pltpu.MemorySpace.SMEM
    return pl.pallas_call(
        kernel,
        out_shape=(jax.ShapeDtypeStruct((M, N), jnp.bfloat16),
                   jax.ShapeDtypeStruct((M, K), jnp.float32)),
        grid=grid,
        in_specs=[pl.BlockSpec(memory_space=smem),                    # lambdas
                  pl.BlockSpec((tm, K), lambda i, j: (i, 0)),         # x
                  pl.BlockSpec((tm, K), lambda i, j: (i, 0)),         # x0
                  pl.BlockSpec((tn, K), lambda i, j: (j, 0))],        # w (bf16)
        out_specs=(pl.BlockSpec((tm, tn), lambda i, j: (i, j)),       # qkv
                   pl.BlockSpec((tm, K), lambda i, j: (i, 0))),       # x_mix
        compiler_params=pltpu.CompilerParams(
            dimension_semantics=("parallel", "arbitrary"),
            vmem_limit_bytes=_VMEM_LIMIT),
    )(lambdas, x, x0, w)


def rms_linear_relu2(x, w, *, tm=256, tn=256, mm_dtype=jnp.bfloat16):
    """u = relu(rms(x) @ w.T)^2 (MLP c_fc with fused prologue/epilogue)."""
    M, K = x.shape
    N, K2 = w.shape
    assert K == K2
    tm = _pick_tile(M, tm, 8)
    tn = _pick_tile(N, tn, 128)
    grid = (M // tm, N // tn)
    kernel = functools.partial(_rms_linear_relu2_kernel, mm_dtype=mm_dtype)
    return pl.pallas_call(
        kernel,
        out_shape=jax.ShapeDtypeStruct((M, N), jnp.bfloat16),
        grid=grid,
        in_specs=[pl.BlockSpec((tm, K), lambda i, j: (i, 0)),
                  pl.BlockSpec((tn, K), lambda i, j: (j, 0))],
        out_specs=pl.BlockSpec((tm, tn), lambda i, j: (i, j)),
        compiler_params=pltpu.CompilerParams(
            dimension_semantics=("parallel", "parallel"),
            vmem_limit_bytes=_VMEM_LIMIT),
    )(x, w)


def linear_residual(x, w, residual, *, tm=256, tn=256, tk=512,
                    mm_dtype=jnp.bfloat16):
    """out = x @ w.T + residual, tiled over (M, N, K) with f32 accumulator."""
    M, K = x.shape
    N, K2 = w.shape
    assert K == K2 and residual.shape == (M, N)
    tm = _pick_tile(M, tm, 8)
    tn = _pick_tile(N, tn, 128)
    tk = _pick_tile(K, tk, 128)
    grid = (M // tm, N // tn, K // tk)
    kernel = functools.partial(_linear_residual_kernel, mm_dtype=mm_dtype)
    return pl.pallas_call(
        kernel,
        out_shape=jax.ShapeDtypeStruct((M, N), jnp.float32),
        grid=grid,
        in_specs=[pl.BlockSpec((tm, tk), lambda i, j, k: (i, k)),
                  pl.BlockSpec((tn, tk), lambda i, j, k: (j, k)),
                  pl.BlockSpec((tm, tn), lambda i, j, k: (i, j))],
        out_specs=pl.BlockSpec((tm, tn), lambda i, j, k: (i, j)),
        scratch_shapes=[pltpu.VMEM((tm, tn), jnp.float32)],
        compiler_params=pltpu.CompilerParams(
            dimension_semantics=("parallel", "parallel", "arbitrary"),
            vmem_limit_bytes=_VMEM_LIMIT),
    )(x, w, residual)


def flash_attention(qkv, ve, lambdas, cos, sin, hsum, rotp, *, num_heads,
                    head_dim, tq=128, tkv=128, mm_dtype=jnp.bfloat16):
    """Fused per-head rms-norm + rotary + value-mix + causal flash attention."""
    T = qkv.shape[0]
    hdim = num_heads * head_dim
    group = hsum.shape[0]
    assert qkv.shape[1] == 3 * hdim and hdim % group == 0
    tq = _pick_tile(T, tq, 8)
    tkv = _pick_tile(T, tkv, 8)
    grid = (T // tq, T // tkv)
    kernel = functools.partial(_flash_attn_kernel, num_heads=num_heads,
                               head_dim=head_dim, group=group,
                               mm_dtype=mm_dtype)
    smem = pltpu.MemorySpace.SMEM
    return pl.pallas_call(
        kernel,
        out_shape=jax.ShapeDtypeStruct((T, hdim), jnp.bfloat16),
        grid=grid,
        in_specs=[
            pl.BlockSpec(memory_space=smem),                        # lambdas
            pl.BlockSpec((tq, hdim), lambda qi, ki: (qi, 0)),       # q cols
            pl.BlockSpec((tkv, hdim), lambda qi, ki: (ki, 1)),      # k cols
            pl.BlockSpec((tkv, hdim), lambda qi, ki: (ki, 2)),      # v cols
            pl.BlockSpec((tkv, hdim), lambda qi, ki: (ki, 0)),      # ve
            pl.BlockSpec((tq, group), lambda qi, ki: (qi, 0)),      # cos (q rows)
            pl.BlockSpec((tq, group), lambda qi, ki: (qi, 0)),      # sin (q rows)
            pl.BlockSpec((tkv, group), lambda qi, ki: (ki, 0)),     # cos (kv rows)
            pl.BlockSpec((tkv, group), lambda qi, ki: (ki, 0)),     # sin (kv rows)
            pl.BlockSpec((group, group), lambda qi, ki: (0, 0)),    # hsum
            pl.BlockSpec((group, group), lambda qi, ki: (0, 0)),    # rotp
        ],
        out_specs=pl.BlockSpec((tq, hdim), lambda qi, ki: (qi, 0)),
        scratch_shapes=[
            pltpu.VMEM((tq, hdim), jnp.float32),           # q (normed+rotated)
            pltpu.VMEM((tq, hdim), jnp.float32),           # acc
            pltpu.VMEM((num_heads, tq, 1), jnp.float32),   # m
            pltpu.VMEM((num_heads, tq, 1), jnp.float32),   # l
        ],
        compiler_params=pltpu.CompilerParams(
            dimension_semantics=("parallel", "arbitrary"),
            vmem_limit_bytes=_VMEM_LIMIT),
    )(lambdas, qkv, qkv, qkv, ve, cos, sin, cos, sin, hsum, rotp)


# ---------------------------------------------------------------------------
# Parameter / constant construction (mirrors the PyTorch module)
# ---------------------------------------------------------------------------
def make_rotary_tables(head_dim, max_seq_len):
    """Half-width cos/sin exactly as the PyTorch Rotary module builds them."""
    dim_quarter = max(1, head_dim // 4)
    angular_freq = (1.0 / 1024) ** jnp.linspace(0, 1, dim_quarter, dtype=jnp.float32)
    angular_freq = jnp.concatenate([angular_freq, jnp.zeros((dim_quarter,), jnp.float32)])
    t = jnp.arange(max_seq_len, dtype=jnp.float32)
    theta = jnp.einsum('i,j->ij', t, angular_freq)           # (S, head_dim // 2)
    return jnp.cos(theta), jnp.sin(theta)


def make_kernel_rotary_tables(cos_half, sin_half, heads_per_group):
    """Lane-dense (S, group) tables; rotation sign baked into sin so that
    y = x * cos + roll_half(x) * sin reproduces the module's rotary."""
    cos_full = jnp.concatenate([cos_half, cos_half], axis=-1)     # (S, head_dim)
    sin_full = jnp.concatenate([sin_half, -sin_half], axis=-1)    # (S, head_dim)
    return (jnp.tile(cos_full, (1, heads_per_group)),
            jnp.tile(sin_full, (1, heads_per_group)))


def make_head_matrices(heads_per_group, head_dim):
    """(group, group) constants: block-ones (per-head sum-of-squares broadcast)
    and the within-head half-roll permutation; applied per 128-lane group."""
    g = heads_per_group * head_dim
    idx = jnp.arange(g)
    head_id = idx // head_dim
    pos = idx % head_dim
    same_head = head_id[:, None] == head_id[None, :]
    hsum = same_head.astype(jnp.float32)
    rolled = (pos + head_dim // 2) % head_dim
    rotp = (same_head & (rolled[:, None] == pos[None, :])).astype(jnp.float32)
    return hsum, rotp


def init_block_params(key, dim, num_heads, max_seq_len):
    head_dim = dim // num_heads
    hdim = num_heads * head_dim
    group = min(hdim, 128)
    assert hdim % group == 0 and group % head_dim == 0
    heads_per_group = group // head_dim

    def uniform(k, shape, fan_in):
        bound = (3.0 ** 0.5) * 0.5 * fan_in ** (-0.5)
        return jax.random.uniform(k, shape, jnp.float32, -bound, bound)

    k1, k2, k3, k4 = jax.random.split(key, 4)
    cos_half, sin_half = make_rotary_tables(head_dim, max_seq_len)
    rope_cos, rope_sin = make_kernel_rotary_tables(cos_half, sin_half, heads_per_group)
    hsum, rotp = make_head_matrices(heads_per_group, head_dim)
    bf16 = jnp.bfloat16
    return {
        "num_heads": num_heads,
        "head_dim": head_dim,
        # NOTE: the PyTorch module zero-inits the attention c_proj and the MLP
        # c_proj; random values are used so those paths are numerically
        # exercised.  Weights are pre-cast to bf16 in HBM (review item); the
        # reference upcasts the SAME bf16 weights so the check stays exact
        # w.r.t. weight quantization.
        "qkv_w": uniform(k1, (3 * hdim, dim), dim).astype(bf16),
        "attn_lambdas": jnp.array([0.5, 0.5], jnp.float32),
        "c_proj_w": uniform(k2, (dim, hdim), hdim).astype(bf16),
        "c_fc_w": uniform(k3, (4 * dim, dim), dim).astype(bf16),
        "mlp_proj_w": uniform(k4, (dim, 4 * dim), 4 * dim).astype(bf16),
        # module init is [1.0, 0.0]; use a non-trivial mix so x0 is exercised.
        "block_lambdas": jnp.array([0.9, 0.1], jnp.float32),
        "cos_half": cos_half, "sin_half": sin_half,
        "rope_cos": rope_cos, "rope_sin": rope_sin,      # (S, group) f32
        "hsum": hsum, "rotp": rotp,                      # (group, group) f32
    }


# ---------------------------------------------------------------------------
# Block forward (Pallas)
# ---------------------------------------------------------------------------
def block_forward(x, ve, x0, params):
    """Block.forward(x, ve, x0, causal block_mask) with attention present."""
    B, T, dim = x.shape
    assert B == 1, "Must use batch size = 1 (matches the PyTorch module)"
    num_heads, head_dim = params["num_heads"], params["head_dim"]
    hdim = num_heads * head_dim

    x2d, x02d = x[0], x0[0]
    ve2d = jnp.zeros((T, hdim), jnp.float32) if ve is None else ve[0]

    # 1) block mix + rms-norm fused into the QKV projection (x_mix emitted too)
    qkv, x_mix = mix_rms_linear(x2d, x02d, params["block_lambdas"],
                                params["qkv_w"])                   # bf16 / f32

    # 2) flash attention: per-head rms-norm + rotary + value mix + causal softmax
    y = flash_attention(qkv, ve2d, params["attn_lambdas"],
                        params["rope_cos"][:T], params["rope_sin"][:T],
                        params["hsum"], params["rotp"],
                        num_heads=num_heads, head_dim=head_dim)    # (T, hdim) bf16

    # 3) attention output projection with the residual add fused in the epilogue
    x_attn = linear_residual(y, params["c_proj_w"], x_mix)         # f32

    # 4) MLP: rms-norm + c_fc + relu^2 fused, then c_proj + residual epilogue
    u = rms_linear_relu2(x_attn, params["c_fc_w"])                 # bf16
    out = linear_residual(u, params["mlp_proj_w"], x_attn)         # f32
    return out[None]


# ---------------------------------------------------------------------------
# Pure-JAX reference (mirrors the PyTorch module; f32 math, same bf16 weights)
# ---------------------------------------------------------------------------
def reference_block_forward(x, ve, x0, params):
    f32 = jnp.float32
    num_heads, head_dim = params["num_heads"], params["head_dim"]
    hdim = num_heads * head_dim
    B, T, dim = x.shape

    def rms(a):
        return a * jax.lax.rsqrt(jnp.mean(a * a, axis=-1, keepdims=True) + _RMS_EPS)

    lam_b = params["block_lambdas"]
    xm = lam_b[0] * x + lam_b[1] * x0
    h = rms(xm)[0]

    qkv = h @ params["qkv_w"].astype(f32).T
    q = qkv[:, :hdim].reshape(T, num_heads, head_dim)
    k = qkv[:, hdim:2 * hdim].reshape(T, num_heads, head_dim)
    v = qkv[:, 2 * hdim:].reshape(T, num_heads, head_dim)
    q, k = rms(q), rms(k)

    dh = head_dim // 2
    cos = params["cos_half"][:T][:, None, :]
    sin = params["sin_half"][:T][:, None, :]

    def rot(a):
        a1, a2 = a[..., :dh], a[..., dh:]
        return jnp.concatenate([a1 * cos + a2 * sin, -a1 * sin + a2 * cos], axis=-1)

    q, k = rot(q), rot(k)
    lam_a = params["attn_lambdas"]
    ve3 = (jnp.zeros((T, num_heads, head_dim), f32) if ve is None
           else ve[0].reshape(T, num_heads, head_dim))
    v = lam_a[0] * v + lam_a[1] * ve3

    qh, kh, vh = (a.transpose(1, 0, 2) for a in (q, k, v))
    s = jnp.einsum('htd,hsd->hts', qh, kh) * _ATTN_SCALE
    mask = jnp.tril(jnp.ones((T, T), bool))
    s = jnp.where(mask[None], s, -jnp.inf)
    p = jax.nn.softmax(s, axis=-1)
    y = jnp.einsum('hts,hsd->htd', p, vh).transpose(1, 0, 2).reshape(T, hdim)

    x1 = xm + (y @ params["c_proj_w"].astype(f32).T)[None]
    h2 = rms(x1)[0]
    u = jnp.square(jnp.maximum(h2 @ params["c_fc_w"].astype(f32).T, 0.0))
    return x1 + (u @ params["mlp_proj_w"].astype(f32).T)[None]


# ---------------------------------------------------------------------------
if __name__ == "__main__":
    dim, num_heads, T, max_seq_len = 128, 4, 64, 128

    key = jax.random.PRNGKey(0)
    kp, kx, kx0, kve = jax.random.split(key, 4)

    params = init_block_params(kp, dim, num_heads, max_seq_len)
    hdim = num_heads * params["head_dim"]

    x = jax.random.normal(kx, (1, T, dim), jnp.float32)
    x0 = jax.random.normal(kx0, (1, T, dim), jnp.float32)
    ve = jax.random.normal(kve, (1, T, hdim), jnp.float32)

    out = jax.block_until_ready(block_forward(x, ve, x0, params))
    ref = reference_block_forward(x, ve, x0, params)
    assert out.shape == (1, T, dim)
    max_err = jnp.max(jnp.abs(out - ref))
    assert jnp.allclose(out, ref, atol=7e-2, rtol=7e-2), f"block mismatch (max abs err {max_err})"

    # also exercise the ve=None branch (v = lambdas[0] * v)
    out2 = jax.block_until_ready(block_forward(x, None, x0, params))
    ref2 = reference_block_forward(x, None, x0, params)
    assert jnp.allclose(out2, ref2, atol=7e-2, rtol=7e-2), "ve=None block mismatch"

    print("KERNEL_OK")
</pallas_src>

<mosaic_0001>
module attributes {stable_mosaic.version = 11 : i64} {
  func.func @_mix_rms_linear_kernel(%arg0: i32, %arg1: i32, %arg2: memref<2xf32, #tpu.memory_space<smem>>, %arg3: memref<64x128xf32, #tpu.memory_space<vmem>>, %arg4: memref<64x128xf32, #tpu.memory_space<vmem>>, %arg5: memref<128x128xbf16, #tpu.memory_space<vmem>>, %arg6: memref<64x128xbf16, #tpu.memory_space<vmem>>, %arg7: memref<64x128xf32, #tpu.memory_space<vmem>>) attributes {dimension_semantics = [#tpu.dimension_semantics<parallel>, #tpu.dimension_semantics<arbitrary>], iteration_bounds = array<i64: 1, 3>, scalar_prefetch = 0 : i64, scratch_operands = 0 : i64, tpu.core_type = #tpu.core_type<tc>, window_params = [{transform_indices = @transform_0, window_bounds = array<i64: 2>}, {transform_indices = @transform_1, window_bounds = array<i64: 64, 128>}, {transform_indices = @transform_2, window_bounds = array<i64: 64, 128>}, {transform_indices = @transform_3, window_bounds = array<i64: 128, 128>}, {transform_indices = @transform_4, window_bounds = array<i64: 64, 128>}, {transform_indices = @transform_5, window_bounds = array<i64: 64, 128>}]} {
    %c0 = arith.constant 0 : index
    %c0_0 = arith.constant 0 : index
    %0 = vector.load %arg3[%c0, %c0_0] : memref<64x128xf32, #tpu.memory_space<vmem>>, vector<64x128xf32>
    %c0_1 = arith.constant 0 : index
    %c0_2 = arith.constant 0 : index
    %1 = vector.load %arg4[%c0_1, %c0_2] : memref<64x128xf32, #tpu.memory_space<vmem>>, vector<64x128xf32>
    %c0_3 = arith.constant 0 : index
    %2 = memref.load %arg2[%c0_3] : memref<2xf32, #tpu.memory_space<smem>>
    %3 = vector.broadcast %2 : f32 to vector<64x128xf32>
    %4 = arith.mulf %3, %0 : vector<64x128xf32>
    %c1 = arith.constant 1 : index
    %5 = memref.load %arg2[%c1] : memref<2xf32, #tpu.memory_space<smem>>
    %6 = vector.broadcast %5 : f32 to vector<64x128xf32>
    %7 = arith.mulf %6, %1 : vector<64x128xf32>
    %8 = arith.addf %4, %7 : vector<64x128xf32>
    %9 = arith.mulf %8, %8 : vector<64x128xf32>
    %cst = arith.constant dense<0.000000e+00> : vector<64xf32>
    %10 = vector.multi_reduction <add>, %9, %cst [1] : vector<64x128xf32> to vector<64xf32>
    %11 = vector.shape_cast %10 : vector<64xf32> to vector<64x1xf32>
    %cst_4 = arith.constant 1.280000e+02 : f32
    %12 = vector.broadcast %cst_4 : f32 to vector<64x1xf32>
    %13 = arith.divf %11, %12 : vector<64x1xf32>
    %cst_5 = arith.constant 1.1920929E-7 : f32
    %14 = vector.broadcast %cst_5 : f32 to vector<64x1xf32>
    %15 = arith.addf %13, %14 : vector<64x1xf32>
    %16 = math.rsqrt %15 : vector<64x1xf32>
    %17 = vector.broadcast %16 : vector<64x1xf32> to vector<64x128xf32>
    %18 = arith.mulf %8, %17 : vector<64x128xf32>
    %19 = arith.truncf %18 : vector<64x128xf32> to vector<64x128xbf16>
    %c0_6 = arith.constant 0 : index
    %c0_7 = arith.constant 0 : index
    %20 = vector.load %arg5[%c0_6, %c0_7] : memref<128x128xbf16, #tpu.memory_space<vmem>>, vector<128x128xbf16>
    %cst_8 = arith.constant dense<0.000000e+00> : vector<64x128xf32>
    %21 = tpu.matmul %19, %20, %cst_8 {dimension_numbers = #tpu.dot_dimension_numbers<[1], [1], [0], [0], [0, 0, 1, 0], [], []>} : vector<64x128xbf16>, vector<128x128xbf16>, vector<64x128xf32> -> vector<64x128xf32>
    %22 = arith.truncf %21 : vector<64x128xf32> to vector<64x128xbf16>
    %c0_9 = arith.constant 0 : index
    %c0_10 = arith.constant 0 : index
    %23 = vector.load %arg6[%c0_9, %c0_10] : memref<64x128xbf16, #tpu.memory_space<vmem>>, vector<64x128xbf16>
    tpu.vector_store %arg6[%c0_9, %c0_10], %22 {strides = array<i32>} : memref<64x128xbf16, #tpu.memory_space<vmem>>, vector<64x128xbf16>,
    %c0_i32 = arith.constant 0 : i32
    %24 = arith.cmpi eq, %arg1, %c0_i32 : i32
    %25 = arith.extui %24 : i1 to i32
    %c0_i32_11 = arith.constant 0 : i32
    %26 = arith.cmpi ne, %25, %c0_i32_11 : i32
    scf.if %26 {
      %c0_12 = arith.constant 0 : index
      %c0_13 = arith.constant 0 : index
      %27 = vector.load %arg7[%c0_12, %c0_13] : memref<64x128xf32, #tpu.memory_space<vmem>>, vector<64x128xf32>
      tpu.vector_store %arg7[%c0_12, %c0_13], %8 {strides = array<i32>} : memref<64x128xf32, #tpu.memory_space<vmem>>, vector<64x128xf32>,
    } else {
    }
    return
  }
  func.func @transform_0(%arg0: i32, %arg1: i32) -> i32 {
    %c0_i32 = arith.constant 0 : i32
    %c0_i32_0 = arith.constant 0 : i32
    return %c0_i32 : i32
  }
  func.func @transform_1(%arg0: i32, %arg1: i32) -> (i32, i32) {
    %c0_i32 = arith.constant 0 : i32
    %c0_i32_0 = arith.constant 0 : i32
    return %arg0, %c0_i32 : i32, i32
  }
  func.func @transform_2(%arg0: i32, %arg1: i32) -> (i32, i32) {
    %c0_i32 = arith.constant 0 : i32
    %c0_i32_0 = arith.constant 0 : i32
    return %arg0, %c0_i32 : i32, i32
  }
  func.func @transform_3(%arg0: i32, %arg1: i32) -> (i32, i32) {
    %c0_i32 = arith.constant 0 : i32
    %c0_i32_0 = arith.constant 0 : i32
    return %arg1, %c0_i32 : i32, i32
  }
  func.func @transform_4(%arg0: i32, %arg1: i32) -> (i32, i32) {
    %c0_i32 = arith.constant 0 : i32
    return %arg0, %arg1 : i32, i32
  }
  func.func @transform_5(%arg0: i32, %arg1: i32) -> (i32, i32) {
    %c0_i32 = arith.constant 0 : i32
    %c0_i32_0 = arith.constant 0 : i32
    return %arg0, %c0_i32 : i32, i32
  }
}

</mosaic_0001>

<llo_original>
// kernel: tpu_custom_call.1
$region0: #{tpu_custom_call.1}
  #allocation0 [shape = 'u32[]', space=smem, size = 0x4, offset = 0x4, fixed_abs, tag = 'smem constant byte address 0x4 - core index']
  #allocation1 [shape = 'u32[144,128]{1,0:T(1,128)}', space=vmem, size = 0x12000, scoped, tag = 'internal scratch']
  %s0 = inlined_call_operand.hbm [shape: f32[2], index: 0, kind: input, shape index: {}]
  %s1 = inlined_call_operand.hbm [shape: f32[64,128], index: 1, kind: input, shape index: {}]
  %s2 = inlined_call_operand.hbm [shape: f32[64,128], index: 2, kind: input, shape index: {}]
  %s3 = inlined_call_operand.hbm [shape: bf16[384,128], index: 3, kind: input, shape index: {}]
  %s4 = inlined_call_operand.hbm [shape: bf16[64,384], index: 4, kind: output, shape index: {0}]
  %s5 = inlined_call_operand.hbm [shape: f32[64,128], index: 5, kind: output, shape index: {1}]
  %6 = xla_tuple %s4, %s5
  %s7 = sld [smem:[#allocation0]]
  $region77: #{tpu_custom_call.1} parent=0
    _
  %s9 = ssub.s32 1, %s7
  %s10 = scalar_select 0, %s9, %s7
  $region1: #{tpu_custom_call.1} parent=0
    #allocation2 [shape = 'u8[512]{0}', space=smem, size = 0x200, scoped, tag = 'input window, operand 0, single buffered']
    #allocation3 [shape = 's32[2]{0}', space=sflag, size = 0x8, scoped, tag = 'scoped memory for tpu_custom_call.1']
    #allocation4 [shape = 's32[2]{0}', space=sflag, size = 0x8, scoped, tag = 'scoped memory for tpu_custom_call.1']
    #allocation5 [shape = 's32[2]{0}', space=sflag, size = 0x8, scoped, tag = 'scoped memory for tpu_custom_call.1']
    #allocation6 [shape = 'u8[32768]{0}', space=vmem, size = 0x8000, scoped, tag = 'input window, operand 1, single buffered']
    #allocation7 [shape = 'u8[32768]{0}', space=vmem, size = 0x8000, scoped, tag = 'input window, operand 2, single buffered']
    #allocation8 [shape = 's32[1]{0}', space=sflag, size = 0x4, scoped, tag = 'scoped memory for tpu_custom_call.1']
    #allocation9 [shape = 'u8[65536]{0}', space=vmem, size = 0x10000, scoped, tag = 'input window, operand 3']
    #allocation10 [shape = 'u8[32768]{0}', space=vmem, size = 0x8000, scoped, tag = 'output window, operand 0']
    #allocation11 [shape = 'u8[32768]{0}', space=vmem, size = 0x8000, scoped, tag = 'output window, operand 1, single buffered']
    #allocation12 [shape = 's32[1]{0}', space=sflag, size = 0x4, scoped, tag = 'scoped memory for tpu_custom_call.1']
    %11 = vsyncpa [#allocation5], 0
    %12 = vsyncpa [#allocation3], 0
    %13 = vsyncpa [#allocation8], 0
    %14 = vsyncpa [#allocation4], 0
    %s15 = scalar_lea.sflag [#allocation4], 1
    %16 = vsyncpa %s15, 0
    %17 = vsyncpa [#allocation12], 0
    loop: start=0, step=1, limit=5
    $region2: #{tpu_custom_call.1} parent=1 // loop_pre_header
      _
    $region3: #{tpu_custom_call.1} parent=1 // loop_header
      %s19 = sphi 0, %s23
      %p20 = scmp.ge.s32.totalorder %s19, 5
      %s26 = sphi 0, %s38
      %s27 = sphi 0, %s34
      %s28 = sphi 0, %s26
      %s29 = sphi 0, %s27
      %s30 = sphi 0, %s28
      %s31 = sphi 0, %s29
      %s39 = sphi 0, %s39
      %s41 = sphi 0, %s39
      %s42 = sphi 0, %s41
      %s56 = sphi 0, %s42
      %s62 = sphi 0, %s64
      %s65 = sphi 0, %s62
      %s66 = sphi 0, %s65
      %s82 = sphi 0, %s66
      %s88 = sphi 0, %s90
      %s91 = sphi 0, %s88
      %s92 = sphi 0, %s91
      %s108 = sphi 0, %s92
      %s114 = sphi 0, %s116
      %s117 = sphi 0, %s114
      %s118 = sphi 0, %s117
      %s134 = sphi 0, %s118
      %s142 = sphi 0, %s144
      %s145 = sphi 0, %s142
      %s146 = sphi 0, %s145
      %s162 = sphi 0, %s146
      %s168 = sphi 0, %s170
      %s171 = sphi 0, %s168
      %s172 = sphi 0, %s171
      %s188 = sphi 0, %s172
    $region4: #{tpu_custom_call.1} parent=1 // loop_header_branch
      %22 = sbr.rel (%p20) target = $region8
    $region5: #{tpu_custom_call.1} parent=1 // loop_body
      %s24 = ssub.s32 %s19, 1
      %s25 = ssub.s32 %s19, 2
      %s32 = sadd.s32 1, %s27
      %p33 = scmp.ge.s32.totalorder %s32, 3
      %s34 = scalar_select %p33, 0, %s32
      %s35 = sadd.s32 1, %s26
      %s36 = scalar_select %p33, %s35, %s26
      %p37 = scmp.ge.s32.totalorder %s36, 1
      %s38 = scalar_select %p37, 0, %s36
      %s40 = sadd.s32 %s39, 1
      %p43 = scmp.eq.s32.totalorder %s19, 2
      %p44 = scmp.ne.s32.totalorder %s39, %s41
      %p45 = scmp.eq.s32.totalorder %s19, 0
      %p46 = por %p44, %p45
      %p47 = scmp.ne.s32.totalorder %s39, %s41
      %p48 = scmp.eq.s32.totalorder %s24, 2
      %p49 = por %p47, %p48
      %p50 = scmp.ne.s32.totalorder %s41, %s42
      %p51 = scmp.eq.s32.totalorder %s24, 0
      %p52 = por %p50, %p51
      %p53 = scmp.ne.s32.totalorder %s41, %s42
      %p54 = scmp.eq.s32.totalorder %s25, 2
      %p55 = por %p53, %p54
      %p57 = scmp.ne.s32.totalorder %s42, %s56
      %p58 = scmp.eq.s32.totalorder %s25, 0
      %p59 = por %p57, %p58
      %s60 = ssub.s32 %s26, %s38
      %p61 = scmp.eq.s32.totalorder %s60, 0
      %s63 = sadd.s32 %s62, 1
      %s64 = scalar_select %p61, %s62, %s63
      %p67 = pneg %p61
      %p68 = scmp.eq.s32.totalorder %s19, 2
      %p69 = por %p67, %p68
      %p70 = scmp.ne.s32.totalorder %s62, %s65
      %p71 = scmp.eq.s32.totalorder %s19, 0
      %p72 = por %p70, %p71
      %p73 = scmp.ne.s32.totalorder %s62, %s65
      %p74 = scmp.eq.s32.totalorder %s24, 2
      %p75 = por %p73, %p74
      %p76 = scmp.ne.s32.totalorder %s65, %s66
      %p77 = scmp.eq.s32.totalorder %s24, 0
      %p78 = por %p76, %p77
      %p79 = scmp.ne.s32.totalorder %s65, %s66
      %p80 = scmp.eq.s32.totalorder %s25, 2
      %p81 = por %p79, %p80
      %p83 = scmp.ne.s32.totalorder %s66, %s82
      %p84 = scmp.eq.s32.totalorder %s25, 0
      %p85 = por %p83, %p84
      %s86 = ssub.s32 %s26, %s38
      %p87 = scmp.eq.s32.totalorder %s86, 0
      %s89 = sadd.s32 %s88, 1
      %s90 = scalar_select %p87, %s88, %s89
      %p93 = pneg %p87
      %p94 = scmp.eq.s32.totalorder %s19, 2
      %p95 = por %p93, %p94
      %p96 = scmp.ne.s32.totalorder %s88, %s91
      %p97 = scmp.eq.s32.totalorder %s19, 0
      %p98 = por %p96, %p97
      %p99 = scmp.ne.s32.totalorder %s88, %s91
      %p100 = scmp.eq.s32.totalorder %s24, 2
      %p101 = por %p99, %p100
      %p102 = scmp.ne.s32.totalorder %s91, %s92
      %p103 = scmp.eq.s32.totalorder %s24, 0
      %p104 = por %p102, %p103
      %p105 = scmp.ne.s32.totalorder %s91, %s92
      %p106 = scmp.eq.s32.totalorder %s25, 2
      %p107 = por %p105, %p106
      %p109 = scmp.ne.s32.totalorder %s92, %s108
      %p110 = scmp.eq.s32.totalorder %s25, 0
      %p111 = por %p109, %p110
      %s112 = ssub.s32 %s27, %s34
      %p113 = scmp.eq.s32.totalorder %s112, 0
      %s115 = sadd.s32 %s114, 1
      %s116 = scalar_select %p113, %s114, %s115
      %p119 = pneg %p113
      %p120 = scmp.eq.s32.totalorder %s19, 2
      %p121 = por %p119, %p120
      %p122 = scmp.ne.s32.totalorder %s114, %s117
      %p123 = scmp.eq.s32.totalorder %s19, 0
      %p124 = por %p122, %p123
      %p125 = scmp.ne.s32.totalorder %s114, %s117
      %p126 = scmp.eq.s32.totalorder %s24, 2
      %p127 = por %p125, %p126
      %p128 = scmp.ne.s32.totalorder %s117, %s118
      %p129 = scmp.eq.s32.totalorder %s24, 0
      %p130 = por %p128, %p129
      %p131 = scmp.ne.s32.totalorder %s117, %s118
      %p132 = scmp.eq.s32.totalorder %s25, 2
      %p133 = por %p131, %p132
      %p135 = scmp.ne.s32.totalorder %s118, %s134
      %p136 = scmp.eq.s32.totalorder %s25, 0
      %p137 = por %p135, %p136
      %s138 = ssub.s32 %s26, %s38
      %s139 = ssub.s32 %s27, %s34
      %s140 = sor.u32 %s138, %s139
      %p141 = scmp.eq.s32.totalorder %s140, 0
      %s143 = sadd.s32 %s142, 1
      %s144 = scalar_select %p141, %s142, %s143
      %p147 = pneg %p141
      %p148 = scmp.eq.s32.totalorder %s19, 2
      %p149 = por %p147, %p148
      %p150 = scmp.ne.s32.totalorder %s142, %s145
      %p151 = scmp.eq.s32.totalorder %s19, 0
      %p152 = por %p150, %p151
      %p153 = scmp.ne.s32.totalorder %s142, %s145
      %p154 = scmp.eq.s32.totalorder %s24, 2
      %p155 = por %p153, %p154
      %p156 = scmp.ne.s32.totalorder %s145, %s146
      %p157 = scmp.eq.s32.totalorder %s24, 0
      %p158 = por %p156, %p157
      %p159 = scmp.ne.s32.totalorder %s145, %s146
      %p160 = scmp.eq.s32.totalorder %s25, 2
      %p161 = por %p159, %p160
      %p163 = scmp.ne.s32.totalorder %s146, %s162
      %p164 = scmp.eq.s32.totalorder %s25, 0
      %p165 = por %p163, %p164
      %s166 = ssub.s32 %s26, %s38
      %p167 = scmp.eq.s32.totalorder %s166, 0
      %s169 = sadd.s32 %s168, 1
      %s170 = scalar_select %p167, %s168, %s169
      %p173 = pneg %p167
      %p174 = scmp.eq.s32.totalorder %s19, 2
      %p175 = por %p173, %p174
      %p176 = scmp.ne.s32.totalorder %s168, %s171
      %p177 = scmp.eq.s32.totalorder %s19, 0
      %p178 = por %p176, %p177
      %p179 = scmp.ne.s32.totalorder %s168, %s171
      %p180 = scmp.eq.s32.totalorder %s24, 2
      %p181 = por %p179, %p180
      %p182 = scmp.ne.s32.totalorder %s171, %s172
      %p183 = scmp.eq.s32.totalorder %s24, 0
      %p184 = por %p182, %p183
      %p185 = scmp.ne.s32.totalorder %s171, %s172
      %p186 = scmp.eq.s32.totalorder %s25, 2
      %p187 = por %p185, %p186
      %p189 = scmp.ne.s32.totalorder %s172, %s188
      %p190 = scmp.eq.s32.totalorder %s25, 0
      %p191 = por %p189, %p190
      %p192 = scmp.le.s32.totalorder 1, %s19
      %p193 = scmp.lt.s32.totalorder %s19, 4
      %p194 = pnand %p192, %p193
      %p195 = pneg %p194
      // Predicated region
      $region9: #{tpu_custom_call.1} parent=5 // pred_check
        _
      $region10: #{tpu_custom_call.1} parent=5 // pred_check_branch
        %197 = sbr.rel (%p194) target = $region12
      $region11: #{tpu_custom_call.1} parent=5 // pred_region
        %s198 = ssub.s32 %s19, 1
        // Predicated region
        $region13: #{tpu_custom_call.1} parent=11 // pred_check
          %p199 = pneg %p52
        $region14: #{tpu_custom_call.1} parent=11 // pred_check_branch
          %201 = sbr.rel (%p199) target = $region16
        $region15: #{tpu_custom_call.1} parent=11 // pred_region
          %s203 = ssub.s32 16, 16
          %204 = vsyncadd [#allocation5], %s203
          %207 = dma.hbm_to_smem %s0, 16, [#allocation2], [#allocation5]
        $region16: #{tpu_custom_call.1} parent=11 // pred_fallthru
          _
        // Predicated region
        $region17: #{tpu_custom_call.1} parent=11 // pred_check
          %p208 = pneg %p78
        $region18: #{tpu_custom_call.1} parent=11 // pred_check_branch
          %210 = sbr.rel (%p208) target = $region20
        $region19: #{tpu_custom_call.1} parent=11 // pred_region
          %s211 = smul.u32 8, %s28
          %s213 = ssub.s32 1024, 1024
          %214 = vsyncadd [#allocation3], %s213
          %s215 = smul.addr %s211, 128
          %s216 = scalar_lea.hbm %s1, %s215
          %s217 = sshll.u32 [#allocation6], 4
          %s218 = int_to_ptr.vmem [resolvable:$true] %s217
          %223 = dma.hbm_to_vmem [thread:$0]  %s216, 1024, %s218, [#allocation3], 128, 128, 8
        $region20: #{tpu_custom_call.1} parent=11 // pred_fallthru
          _
        // Predicated region
        $region21: #{tpu_custom_call.1} parent=11 // pred_check
          %p224 = pneg %p104
        $region22: #{tpu_custom_call.1} parent=11 // pred_check_branch
          %226 = sbr.rel (%p224) target = $region24
        $region23: #{tpu_custom_call.1} parent=11 // pred_region
          %s227 = smul.u32 8, %s28
          %s229 = ssub.s32 1024, 1024
          %230 = vsyncadd [#allocation8], %s229
          %s231 = smul.addr %s227, 128
          %s232 = scalar_lea.hbm %s2, %s231
          %s233 = sshll.u32 [#allocation7], 4
          %s234 = int_to_ptr.vmem [resolvable:$true] %s233
          %239 = dma.hbm_to_vmem [thread:$0]  %s232, 1024, %s234, [#allocation8], 128, 128, 8
        $region24: #{tpu_custom_call.1} parent=11 // pred_fallthru
          _
      $region12: #{tpu_custom_call.1} parent=5 // pred_fallthru
        _
      %p240 = scmp.lt.s32.totalorder %s19, 3
      // Predicated region
      $region25: #{tpu_custom_call.1} parent=5 // pred_check
        %p241 = pneg %p240
      $region26: #{tpu_custom_call.1} parent=5 // pred_check_branch
        %243 = sbr.rel (%p241) target = $region28
      $region27: #{tpu_custom_call.1} parent=5 // pred_region
        // Predicated region
        $region29: #{tpu_custom_call.1} parent=27 // pred_check
          %p244 = pneg %p124
        $region30: #{tpu_custom_call.1} parent=27 // pred_check_branch
          %246 = sbr.rel (%p244) target = $region32
        $region31: #{tpu_custom_call.1} parent=27 // pred_region
          %s247 = sand.u32 %s19, 1
          %s248 = scalar_lea.sflag [#allocation3], %s247
          %s249 = sand.u32 %s114, 1
          %s250 = smul.addr %s249, 64
          %s251 = scalar_lea.vmem [#allocation9], %s250
          %s252 = smul.u32 16, %s27
          %s254 = ssub.s32 1024, 1024
          %255 = vsyncadd %s248, %s254
          %s256 = smul.addr %s252, 64
          %s257 = scalar_lea.hbm %s3, %s256
          %s258 = sshll.u32 %s251, 4
          %s259 = int_to_ptr.vmem [resolvable:$true] %s258
          %264 = dma.hbm_to_vmem [thread:$0]  %s257, 1024, %s259, %s248, 64, 64, 4
        $region32: #{tpu_custom_call.1} parent=27 // pred_fallthru
          _
      $region28: #{tpu_custom_call.1} parent=5 // pred_fallthru
        _
      %p265 = scmp.le.s32.totalorder 1, %s19
      %p266 = scmp.lt.s32.totalorder %s19, 4
      %p267 = pnand %p265, %p266
      %p268 = pneg %p267
      // Predicated region
      $region33: #{tpu_custom_call.1} parent=5 // pred_check
        _
      $region34: #{tpu_custom_call.1} parent=5 // pred_check_branch
        %270 = sbr.rel (%p267) target = $region36
      $region35: #{tpu_custom_call.1} parent=5 // pred_region
        %s271 = ssub.s32 %s19, 1
        // Predicated region
        $region37: #{tpu_custom_call.1} parent=35 // pred_check
          %p272 = pneg %p52
        $region38: #{tpu_custom_call.1} parent=35 // pred_check_branch
          %274 = sbr.rel (%p272) target = $region40
        $region39: #{tpu_custom_call.1} parent=35 // pred_region
          %275 = dma.done [#allocation5], 16
        $region40: #{tpu_custom_call.1} parent=35 // pred_fallthru
          _
        // Predicated region
        $region41: #{tpu_custom_call.1} parent=35 // pred_check
          %p276 = pneg %p78
        $region42: #{tpu_custom_call.1} parent=35 // pred_check_branch
          %278 = sbr.rel (%p276) target = $region44
        $region43: #{tpu_custom_call.1} parent=35 // pred_region
          %279 = dma.done [#allocation3], 1024
        $region44: #{tpu_custom_call.1} parent=35 // pred_fallthru
          _
        // Predicated region
        $region45: #{tpu_custom_call.1} parent=35 // pred_check
          %p280 = pneg %p104
        $region46: #{tpu_custom_call.1} parent=35 // pred_check_branch
          %282 = sbr.rel (%p280) target = $region48
        $region47: #{tpu_custom_call.1} parent=35 // pred_region
          %283 = dma.done [#allocation8], 1024
        $region48: #{tpu_custom_call.1} parent=35 // pred_fallthru
          _
        %s284 = sand.u32 %s24, 1
        %s285 = scalar_lea.sflag [#allocation3], %s284
        %s286 = sand.u32 %s117, 1
        %s287 = smul.addr %s286, 64
        %s288 = scalar_lea.vmem [#allocation9], %s287
        // Predicated region
        $region49: #{tpu_custom_call.1} parent=35 // pred_check
          %p289 = pneg %p130
        $region50: #{tpu_custom_call.1} parent=35 // pred_check_branch
          %291 = sbr.rel (%p289) target = $region52
        $region51: #{tpu_custom_call.1} parent=35 // pred_region
          %292 = dma.done %s285, 1024
        $region52: #{tpu_custom_call.1} parent=35 // pred_fallthru
          _
        %293 = sfence
        %p294 = pneg %p52
        %p295 = pneg %p49
        %p296 = pneg %p78
        %p297 = pneg %p75
        %p298 = pneg %p104
        %p299 = pneg %p101
        %s300 = sand.u32 %s24, 1
        %s301 = scalar_lea.sflag [#allocation3], %s300
        %s302 = sand.u32 %s117, 1
        %s303 = smul.addr %s302, 64
        %s304 = scalar_lea.vmem [#allocation9], %s303
        %p305 = pneg %p130
        %p306 = pneg %p127
        %p307 = pneg %p158
        %p308 = pneg %p155
        %s309 = sand.u32 %s145, 1
        %s310 = scalar_lea.sflag [#allocation4], %s309
        %s311 = sand.u32 %s145, 1
        %s312 = smul.addr %s311, 32
        %s313 = scalar_lea.vmem [#allocation10], %s312
        %p314 = pneg %p184
        %p315 = pneg %p181
        %s316 = smul.u32 8, %s28
        %s317 = smul.u32 8, %s28
        %s318 = smul.u32 16, %s29
        %s319 = smul.u32 8, %s28
        %s320 = smul.u32 8, %s28
        %v322 = vld [vmem:[#allocation6] sm:$0xff]
        %v323 = vld [vmem:[#allocation6 + $0x8] sm:$0xff]
        %v324 = vld [vmem:[#allocation6 + $0x10] sm:$0xff]
        %v325 = vld [vmem:[#allocation6 + $0x18] sm:$0xff]
        %v326 = vld [vmem:[#allocation6 + $0x20] sm:$0xff]
        %v327 = vld [vmem:[#allocation6 + $0x28] sm:$0xff]
        %v328 = vld [vmem:[#allocation6 + $0x30] sm:$0xff]
        %v329 = vld [vmem:[#allocation6 + $0x38] sm:$0xff]
        %v330 = vld [vmem:[#allocation7] sm:$0xff]
        %v331 = vld [vmem:[#allocation7 + $0x8] sm:$0xff]
        %v332 = vld [vmem:[#allocation7 + $0x10] sm:$0xff]
        %v333 = vld [vmem:[#allocation7 + $0x18] sm:$0xff]
        %v334 = vld [vmem:[#allocation7 + $0x20] sm:$0xff]
        %v335 = vld [vmem:[#allocation7 + $0x28] sm:$0xff]
        %v336 = vld [vmem:[#allocation7 + $0x30] sm:$0xff]
        %v337 = vld [vmem:[#allocation7 + $0x38] sm:$0xff]
        %s338 = sld [smem:[#allocation2]]
        %v339 = vstv %s338
        %v340 = vmul.f32 %v339, %v322
        %v341 = vmul.f32 %v339, %v323
        %v342 = vmul.f32 %v339, %v324
        %v343 = vmul.f32 %v339, %v325
        %v344 = vmul.f32 %v339, %v326
        %v345 = vmul.f32 %v339, %v327
        %v346 = vmul.f32 %v339, %v328
        %v347 = vmul.f32 %v339, %v329
        %s348 = sld [smem:[#allocation2 + $0x1]]
        %v349 = vstv %s348
        %v350 = vmul.f32 %v349, %v330
        %v351 = vmul.f32 %v349, %v331
        %v352 = vmul.f32 %v349, %v332
        %v353 = vmul.f32 %v349, %v333
        %v354 = vmul.f32 %v349, %v334
        %v355 = vmul.f32 %v349, %v335
        %v356 = vmul.f32 %v349, %v336
        %v357 = vmul.f32 %v349, %v337
        %v358 = vadd.f32 %v340, %v350
        %v359 = vadd.f32 %v341, %v351
        %v360 = vadd.f32 %v342, %v352
        %v361 = vadd.f32 %v343, %v353
        %v362 = vadd.f32 %v344, %v354
        %v363 = vadd.f32 %v345, %v355
        %v364 = vadd.f32 %v346, %v356
        %v365 = vadd.f32 %v347, %v357
        %v366 = vmul.f32 %v358, %v358
        %v367 = vmul.f32 %v359, %v359
        %v368 = vmul.f32 %v360, %v360
        %v369 = vmul.f32 %v361, %v361
        %v370 = vmul.f32 %v362, %v362
        %v371 = vmul.f32 %v363, %v363
        %v372 = vmul.f32 %v364, %v364
        %v373 = vmul.f32 %v365, %v365
        %374 = vadd.xlane.f32.xlu0 %v366
        %v375 = vpop.xlane.xlu0 %374
        %376 = vadd.xlane.f32.xlu0 %v367
        %v377 = vpop.xlane.xlu0 %376
        %378 = vadd.xlane.f32.xlu0 %v368
        %v379 = vpop.xlane.xlu0 %378
        %380 = vadd.xlane.f32.xlu0 %v369
        %v381 = vpop.xlane.xlu0 %380
        %382 = vadd.xlane.f32.xlu0 %v370
        %v383 = vpop.xlane.xlu0 %382
        %384 = vadd.xlane.f32.xlu0 %v371
        %v385 = vpop.xlane.xlu0 %384
        %386 = vadd.xlane.f32.xlu0 %v372
        %v387 = vpop.xlane.xlu0 %386
        %388 = vadd.xlane.f32.xlu0 %v373
        %v389 = vpop.xlane.xlu0 %388
        %v390 = vrcp.pop 128.0
        %v391 = vmul.f32 %v375, %v390
        %v392 = vmul.f32 %v377, %v390
        %v393 = vmul.f32 %v379, %v390
        %v394 = vmul.f32 %v381, %v390
        %v395 = vmul.f32 %v383, %v390
        %v396 = vmul.f32 %v385, %v390
        %v397 = vmul.f32 %v387, %v390
        %v398 = vmul.f32 %v389, %v390
        %v399 = vadd.f32 %v391, 1.1920929e-07
        %v400 = vadd.f32 %v392, 1.1920929e-07
        %v401 = vadd.f32 %v393, 1.1920929e-07
        %v402 = vadd.f32 %v394, 1.1920929e-07
        %v403 = vadd.f32 %v395, 1.1920929e-07
        %v404 = vadd.f32 %v396, 1.1920929e-07
        %v405 = vadd.f32 %v397, 1.1920929e-07
        %v406 = vadd.f32 %v398, 1.1920929e-07
        %v407 = vrsqrt.pop %v399
        %v408 = vrsqrt.pop %v400
        %v409 = vrsqrt.pop %v401
        %v410 = vrsqrt.pop %v402
        %v411 = vrsqrt.pop %v403
        %v412 = vrsqrt.pop %v404
        %v413 = vrsqrt.pop %v405
        %v414 = vrsqrt.pop %v406
        %v415 = vmul.f32 %v358, %v407
        %v416 = vmul.f32 %v359, %v408
        %v417 = vmul.f32 %v360, %v409
        %v418 = vmul.f32 %v361, %v410
        %v419 = vmul.f32 %v362, %v411
        %v420 = vmul.f32 %v363, %v412
        %v421 = vmul.f32 %v364, %v413
        %v422 = vmul.f32 %v365, %v414
        %v423 = vpack.c.bf16 %v416, %v415
        %v424 = vpack.c.bf16 %v418, %v417
        %v425 = vpack.c.bf16 %v420, %v419
        %v426 = vpack.c.bf16 %v422, %v421
        %v427 = vld [vmem:[%s288] sm:$0xf]
        %v428 = vld [vmem:[%s288 + $0x4] sm:$0xf]
        %v429 = vld [vmem:[%s288 + $0x8] sm:$0xf]
        %v430 = vld [vmem:[%s288 + $0xc] sm:$0xf]
        %v431 = vld [vmem:[%s288 + $0x10] sm:$0xf]
        %v432 = vld [vmem:[%s288 + $0x14] sm:$0xf]
        %v433 = vld [vmem:[%s288 + $0x18] sm:$0xf]
        %v434 = vld [vmem:[%s288 + $0x1c] sm:$0xf]
        %v435 = vld [vmem:[%s288 + $0x20] sm:$0xf]
        %v436 = vld [vmem:[%s288 + $0x24] sm:$0xf]
        %v437 = vld [vmem:[%s288 + $0x28] sm:$0xf]
        %v438 = vld [vmem:[%s288 + $0x2c] sm:$0xf]
        %v439 = vld [vmem:[%s288 + $0x30] sm:$0xf]
        %v440 = vld [vmem:[%s288 + $0x34] sm:$0xf]
        %v441 = vld [vmem:[%s288 + $0x38] sm:$0xf]
        %v442 = vld [vmem:[%s288 + $0x3c] sm:$0xf]
        %v459 = vunpack.c.l.b16 %v427
        %v460 = vunpack.c.l.b16 %v428
        %v461 = vunpack.c.l.b16 %v429
        %v462 = vunpack.c.l.b16 %v430
        %v463 = vunpack.c.l.b16 %v431
        %v464 = vunpack.c.l.b16 %v432
        %v465 = vunpack.c.l.b16 %v433
        %v466 = vunpack.c.l.b16 %v434
        %v467 = vunpack.c.l.b16 %v435
        %v468 = vunpack.c.l.b16 %v436
        %v469 = vunpack.c.l.b16 %v437
        %v470 = vunpack.c.l.b16 %v438
        %v471 = vunpack.c.l.b16 %v439
        %v472 = vunpack.c.l.b16 %v440
        %v473 = vunpack.c.l.b16 %v441
        %v474 = vunpack.c.l.b16 %v442
        %v475 = vpack.c.b16 %v460, %v459
        %v476 = vpack.c.b16 %v462, %v461
        %v477 = vpack.c.b16 %v464, %v463
        %v478 = vpack.c.b16 %v466, %v465
        %v479 = vpack.c.b16 %v468, %v467
        %v480 = vpack.c.b16 %v470, %v469
        %v481 = vpack.c.b16 %v472, %v471
        %v482 = vpack.c.b16 %v474, %v473
        %491 = vmatprep.subr.bf16.mxu0 0
        %492 = vmatpush1.bf16.xpose.msra.mxu0 %v475
        %493 = vmatprep.subr.bf16.mxu0 0
        %494 = vmatpush1.bf16.xpose.msra.mxu0 %v476
        %495 = vmatprep.subr.bf16.mxu0 0
        %496 = vmatpush1.bf16.xpose.msra.mxu0 %v477
        %497 = vmatprep.subr.bf16.mxu0 0
        %498 = vmatpush1.bf16.xpose.msra.mxu0 %v478
        %499 = vmatprep.subr.bf16.mxu0 0
        %500 = vmatpush1.bf16.xpose.msra.mxu0 %v479
        %501 = vmatprep.subr.bf16.mxu0 0
        %502 = vmatpush1.bf16.xpose.msra.mxu0 %v480
        %503 = vmatprep.subr.bf16.mxu0 0
        %504 = vmatpush1.bf16.xpose.msra.mxu0 %v481
        %505 = vmatprep.subr.bf16.mxu0 0
        %506 = vmatpush1.bf16.xpose.msra.mxu0 %v482
        %507 = vmatprep.subr.bf16.mxu0 0
        %508 = vmatpush1.bf16.xpose.msra.mxu0 0
        %509 = vmatprep.subr.bf16.mxu0 0
        %510 = vmatpush1.bf16.xpose.msra.mxu0 0
        %511 = vmatprep.subr.bf16.mxu0 0
        %512 = vmatpush1.bf16.xpose.msra.mxu0 0
        %513 = vmatprep.subr.bf16.mxu0 0
        %514 = vmatpush1.bf16.xpose.msra.mxu0 0
        %515 = vmatprep.subr.bf16.mxu0 0
        %516 = vmatpush1.bf16.xpose.msra.mxu0 0
        %517 = vmatprep.subr.bf16.mxu0 0
        %518 = vmatpush1.bf16.xpose.msra.mxu0 0
        %519 = vmatprep.subr.bf16.mxu0 0
        %520 = vmatpush1.bf16.xpose.msra.mxu0 0
        %521 = vmatprep.subr.bf16.mxu0 0
        %522 = vmatpush1.bf16.xpose.msra.mxu0 0
        %523 = vmatprep.mubr.bf16.mxu0 0
        %524 = vmatmul.mubr.bf16.gmra.mrb[0].mxu0 %v423
        %v525 = vpop.f32.mrb[0].mxu0
        %v526 = vadd.f32 0.0, %v525
        %v527 = vpop.f32.mrb[0].mxu0
        %v528 = vpop.f32.mrb[0].mxu0
        %v529 = vadd.f32 0.0, %v528
        %v530 = vpop.f32.mrb[0].mxu0
        %531 = vmatprep.mubr.bf16.mxu0 0
        %532 = vmatmul.mubr.bf16.gmra.mrb[0].mxu0 %v424
        %v533 = vpop.f32.mrb[0].mxu0
        %v534 = vadd.f32 0.0, %v533
        %v535 = vpop.f32.mrb[0].mxu0
        %v536 = vpop.f32.mrb[0].mxu0
        %v537 = vadd.f32 0.0, %v536
        %v538 = vpop.f32.mrb[0].mxu0
        %539 = vmatprep.mubr.bf16.mxu0 0
        %540 = vmatmul.mubr.bf16.gmra.mrb[0].mxu0 %v425
        %v541 = vpop.f32.mrb[0].mxu0
        %v542 = vadd.f32 0.0, %v541
        %v543 = vpop.f32.mrb[0].mxu0
        %v544 = vpop.f32.mrb[0].mxu0
        %v545 = vadd.f32 0.0, %v544
        %v546 = vpop.f32.mrb[0].mxu0
        %547 = vmatprep.mubr.bf16.mxu0 0
        %548 = vmatmul.mubr.bf16.gmra.mrb[0].mxu0 %v426
        %v549 = vpop.f32.mrb[0].mxu0
        %v550 = vadd.f32 0.0, %v549
        %v551 = vpop.f32.mrb[0].mxu0
        %v552 = vpop.f32.mrb[0].mxu0
        %v553 = vadd.f32 0.0, %v552
        %v554 = vpop.f32.mrb[0].mxu0
        %555 = vdwg.mxu0
        %v556 = vpack.c.bf16 %v529, %v526
        %v557 = vpack.c.bf16 %v537, %v534
        %v558 = vpack.c.bf16 %v545, %v542
        %v559 = vpack.c.bf16 %v553, %v550
        %v564 = vunpack.c.l.b16 %v556
        %v565 = vunpack.c.h.b16 %v556
        %v566 = vunpack.c.l.b16 %v557
        %v567 = vunpack.c.h.b16 %v557
        %v568 = vunpack.c.l.b16 %v558
        %v569 = vunpack.c.h.b16 %v558
        %v570 = vunpack.c.l.b16 %v559
        %v571 = vunpack.c.h.b16 %v559
        %v572 = vpack.c.b16 %v564, %v564
        %v573 = vpack.c.b16 %v565, %v565
        %v574 = vpack.c.b16 %v566, %v566
        %v575 = vpack.c.b16 %v567, %v567
        %v576 = vpack.c.b16 %v568, %v568
        %v577 = vpack.c.b16 %v569, %v569
        %v578 = vpack.c.b16 %v570, %v570
        %v579 = vpack.c.b16 %v571, %v571
        %588 = vst [vmem:[%s313] sm:$0xf] %v572
        %589 = vst [vmem:[%s313 + $0x4] sm:$0xf] %v573
        %590 = vst [vmem:[%s313 + $0x8] sm:$0xf] %v574
        %591 = vst [vmem:[%s313 + $0xc] sm:$0xf] %v575
        %592 = vst [vmem:[%s313 + $0x10] sm:$0xf] %v576
        %593 = vst [vmem:[%s313 + $0x14] sm:$0xf] %v577
        %594 = vst [vmem:[%s313 + $0x18] sm:$0xf] %v578
        %595 = vst [vmem:[%s313 + $0x1c] sm:$0xf] %v579
        %p596 = scmp.eq.s32.totalorder %s29, 0
        // Predicated region
        $region53: #{tpu_custom_call.1} parent=35 // pred_check
          %p597 = pneg %p596
        $region54: #{tpu_custom_call.1} parent=35 // pred_check_branch
          %599 = sbr.rel (%p597) target = $region56
        $region55: #{tpu_custom_call.1} parent=35 // pred_region
          %600 = vst [vmem:[#allocation11] sm:$0xff] %v358
          %601 = vst [vmem:[#allocation11 + $0x8] sm:$0xff] %v359
          %602 = vst [vmem:[#allocation11 + $0x10] sm:$0xff] %v360
          %603 = vst [vmem:[#allocation11 + $0x18] sm:$0xff] %v361
          %604 = vst [vmem:[#allocation11 + $0x20] sm:$0xff] %v362
          %605 = vst [vmem:[#allocation11 + $0x28] sm:$0xff] %v363
          %606 = vst [vmem:[#allocation11 + $0x30] sm:$0xff] %v364
          %607 = vst [vmem:[#allocation11 + $0x38] sm:$0xff] %v365
        $region56: #{tpu_custom_call.1} parent=35 // pred_fallthru
          _
        %s608 = sand.u32 %s145, 1
        %s609 = scalar_lea.sflag [#allocation4], %s608
        %s610 = sand.u32 %s145, 1
        %s611 = smul.addr %s610, 32
        %s612 = scalar_lea.vmem [#allocation10], %s611
        // Predicated region
        $region57: #{tpu_custom_call.1} parent=35 // pred_check
          %p613 = pneg %p155
        $region58: #{tpu_custom_call.1} parent=35 // pred_check_branch
          %615 = sbr.rel (%p613) target = $region60
        $region59: #{tpu_custom_call.1} parent=35 // pred_region
          %s616 = smul.u32 8, %s28
          %s618 = ssub.s32 512, 512
          %619 = vsyncadd %s609, %s618
          %s620 = smul.addr %s616, 3
          %s621 = sadd.s32 %s29, %s620
          %s622 = smul.addr %s621, 64
          %s623 = scalar_lea.hbm %s4, %s622
          %s624 = sshll.u32 %s612, 4
          %s625 = int_to_ptr.vmem [resolvable:$true] %s624
          %630 = dma.vmem_to_hbm [thread:$0]  %s625, 512, %s623, %s609, 64, 192, 4
        $region60: #{tpu_custom_call.1} parent=35 // pred_fallthru
          _
        // Predicated region
        $region61: #{tpu_custom_call.1} parent=35 // pred_check
          %p631 = pneg %p181
        $region62: #{tpu_custom_call.1} parent=35 // pred_check_branch
          %633 = sbr.rel (%p631) target = $region64
        $region63: #{tpu_custom_call.1} parent=35 // pred_region
          %s634 = smul.u32 8, %s28
          %s636 = ssub.s32 1024, 1024
          %637 = vsyncadd [#allocation12], %s636
          %s638 = smul.addr %s634, 128
          %s639 = scalar_lea.hbm %s5, %s638
          %s640 = sshll.u32 [#allocation11], 4
          %s641 = int_to_ptr.vmem [resolvable:$true] %s640
          %646 = dma.vmem_to_hbm [thread:$0]  %s641, 1024, %s639, [#allocation12], 128, 128, 8
        $region64: #{tpu_custom_call.1} parent=35 // pred_fallthru
          _
        // Predicated region
        $region65: #{tpu_custom_call.1} parent=35 // pred_check
          %p647 = pneg %p181
        $region66: #{tpu_custom_call.1} parent=35 // pred_check_branch
          %649 = sbr.rel (%p647) target = $region68
        $region67: #{tpu_custom_call.1} parent=35 // pred_region
          %650 = dma.done [#allocation12], 1024
        $region68: #{tpu_custom_call.1} parent=35 // pred_fallthru
          _
      $region36: #{tpu_custom_call.1} parent=5 // pred_fallthru
        _
      %p651 = scmp.le.s32.totalorder 2, %s19
      // Predicated region
      $region69: #{tpu_custom_call.1} parent=5 // pred_check
        %p652 = pneg %p651
      $region70: #{tpu_custom_call.1} parent=5 // pred_check_branch
        %654 = sbr.rel (%p652) target = $region72
      $region71: #{tpu_custom_call.1} parent=5 // pred_region
        %s655 = ssub.s32 %s19, 2
        // Predicated region
        $region73: #{tpu_custom_call.1} parent=71 // pred_check
          %p656 = pneg %p161
        $region74: #{tpu_custom_call.1} parent=71 // pred_check_branch
          %658 = sbr.rel (%p656) target = $region76
        $region75: #{tpu_custom_call.1} parent=71 // pred_region
          %s659 = sand.u32 %s146, 1
          %s660 = scalar_lea.sflag [#allocation4], %s659
          %s661 = sand.u32 %s146, 1
          %s662 = smul.addr %s661, 32
          %s663 = scalar_lea.vmem [#allocation10], %s662
          %664 = dma.done %s660, 512
        $region76: #{tpu_custom_call.1} parent=71 // pred_fallthru
          _
      $region72: #{tpu_custom_call.1} parent=5 // pred_fallthru
        _
    $region6: #{tpu_custom_call.1} parent=1 // loop_footer
      %s23 = sadd.s32 1, %s19
    $region7: #{tpu_custom_call.1} parent=1 // loop_footer_branch
      %18 = sbr.rel target = $region3
    $region8: #{tpu_custom_call.1} parent=1 // loop_exit
      _
    %665 = vsyncpa [#allocation3], 1
    %s666 = scalar_lea.sflag [#allocation3], 1
    %667 = vsyncpa %s666, 1
    %668 = vsyncpa [#allocation8], 1
    %669 = vsyncpa [#allocation4], 1
    %s670 = scalar_lea.sflag [#allocation4], 1
    %671 = vsyncpa %s670, 1
    %672 = vsyncpa [#allocation12], 1
    %673 = vsyncpa [#allocation5], 1
    %s674 = scalar_lea.sflag [#allocation5], 1
    %675 = vsyncpa %s674, 1

</llo_original>
